<compile_context>
chip_gen: v6e
topology: v6e:2x2x1
jax: 0.10.0
libtpu: 0.0.40
codegen_flags: <defaults>
</compile_context>

<pallas_src>
import functools

import numpy as np
import jax
import jax.numpy as jnp
from jax.experimental import pallas as pl
from jax.experimental.pallas import tpu as pltpu


_SUBLANES = 8                          # f32 sublanes per vreg
_MAX_BLOCK_COLS = 64 * 1024            # (8, 65536) f32 block = 2 MiB / buffer
_VMEM_LIMIT_BYTES = 32 * 1024 * 1024   # 3 streams x 2 bufs x 2 MiB fits easily


def _pick_block_cols(n):
    """Lane-dense column-block size: multiple of 128, capped at _MAX_BLOCK_COLS."""
    cols = (n + _SUBLANES - 1) // _SUBLANES
    cols = ((cols + 127) // 128) * 128
    return max(128, min(_MAX_BLOCK_COLS, cols))


def _pad_to_slab(x, n_pad):
    """Zero-pad flat f32 vector to n_pad elements, reshape to (8, n_pad//8).

    Done once per input; both kernels consume the same slabs."""
    return jnp.pad(x.astype(jnp.float32), (0, n_pad - x.shape[0])).reshape(
        _SUBLANES, n_pad // _SUBLANES
    )


def _bce_base(y):
    """Stable core of BCE-with-logits: max(-y, 0) + log1p(exp(-|y|))."""
    return jnp.maximum(-y, 0.0) + jnp.log1p(jnp.exp(-jnp.abs(y)))


# ----------------------------- Pallas kernels ------------------------------

def _loss_mul_kernel(y_ref, t_ref, lm_ref, *, n_valid, total_cols, block_cols):
    """loss_mul = BCE_with_logits(y, t) * t; padded-tail positions -> +inf."""
    i = pl.program_id(0)
    y = y_ref[...]
    t = t_ref[...]
    lm = ((1.0 - t) * y + _bce_base(y)) * t
    # global flat index of each element in the (8, total_cols) slab
    row = jax.lax.broadcasted_iota(jnp.int32, y.shape, 0)
    col = jax.lax.broadcasted_iota(jnp.int32, y.shape, 1) + i * block_cols
    valid = row * total_cols + col < n_valid
    # +inf so padded entries never rank among the k smallest (k <= n_valid)
    lm_ref[...] = jnp.where(valid, lm, jnp.inf)


def _masked_sum_kernel(scal_ref, lm_ref, y_ref, t_ref, out_ref, sum_ref, cnt_ref):
    """Accumulate pos-weighted BCE and kept-count over {loss_mul <= thresh}.

    scal_ref (SMEM): [thresh, pos_weight - 1] runtime scalars (no recompiles).
    Accumulators are fixed (8, 1) VMEM scratch (independent of block size);
    the grid axis is a sequential reduction; scalar outputs land in SMEM.
    """
    i = pl.program_id(0)

    @pl.when(i == 0)
    def _init():
        sum_ref[...] = jnp.zeros_like(sum_ref)
        cnt_ref[...] = jnp.zeros_like(cnt_ref)

    thresh = scal_ref[0]
    pw_minus_1 = scal_ref[1]

    y = y_ref[...]
    t = t_ref[...]
    base = _bce_base(y)
    log_weight = 1.0 + pw_minus_1 * t
    loss_w = (1.0 - t) * y + log_weight * base

    # +inf padded tail of lm drops out automatically (inf > thresh).
    keep = (lm_ref[...] <= thresh).astype(jnp.float32)

    sum_ref[...] += jnp.sum(loss_w * keep, axis=1, keepdims=True)
    cnt_ref[...] += jnp.sum(keep, axis=1, keepdims=True)

    @pl.when(i == pl.num_programs(0) - 1)
    def _finalize():
        out_ref[0] = jnp.sum(sum_ref[...])
        out_ref[1] = jnp.sum(cnt_ref[...])


# ------------------------------ wrappers ------------------------------------

def _tce_loss_impl(y, t, num_remember, pos_weight):
    """num_remember (int32) and pos_weight (f32) are runtime scalars."""
    n = y.shape[0]
    bc = _pick_block_cols(n)
    blk = _SUBLANES * bc
    n_pad = ((n + blk - 1) // blk) * blk
    cols = n_pad // _SUBLANES
    n_blocks = cols // bc

    y2 = _pad_to_slab(y, n_pad)
    t2 = _pad_to_slab(t, n_pad)

    blk_spec = pl.BlockSpec((_SUBLANES, bc), lambda i: (0, i))

    # ---- kernel 1: per-element loss_mul (padded tail -> +inf) ----
    lm = pl.pallas_call(
        functools.partial(_loss_mul_kernel, n_valid=n, total_cols=cols,
                          block_cols=bc),
        out_shape=jax.ShapeDtypeStruct((_SUBLANES, cols), jnp.float32),
        grid=(n_blocks,),
        in_specs=[blk_spec, blk_spec],
        out_specs=blk_spec,
        compiler_params=pltpu.CompilerParams(
            dimension_semantics=("parallel",),      # splits across TCs on v7x
            vmem_limit_bytes=_VMEM_LIMIT_BYTES),
    )(y2, t2)

    # TODO(synk): global k-th-smallest selection (np.argsort in the reference)
    # has no clean Pallas/TPU equivalent; one XLA sort (static shape) plus a
    # dynamic index (runtime k) replaces the old per-drop_rate top_k + gather.
    sorted_lm = jnp.sort(lm.reshape(-1))
    kth = jnp.maximum(num_remember - 1, 0)
    thresh = jax.lax.dynamic_slice_in_dim(sorted_lm, kth, 1)[0]

    scalars = jnp.stack([thresh, pos_weight.astype(jnp.float32) - 1.0])

    # ---- kernel 2: masked pos-weighted BCE sum + kept count ----
    # TODO(synk): on v7x this sequential reduction could be split across the
    # two TensorCores (per-core partials + one add in XLA) for ~2x.
    sums = pl.pallas_call(
        _masked_sum_kernel,
        out_shape=jax.ShapeDtypeStruct((2,), jnp.float32),
        grid=(n_blocks,),
        in_specs=[
            pl.BlockSpec(memory_space=pltpu.MemorySpace.SMEM),  # [thresh, pw-1]
            blk_spec,   # loss_mul
            blk_spec,   # y
            blk_spec,   # t
        ],
        out_specs=pl.BlockSpec(memory_space=pltpu.MemorySpace.SMEM),
        scratch_shapes=[pltpu.VMEM((_SUBLANES, 1), jnp.float32),
                        pltpu.VMEM((_SUBLANES, 1), jnp.float32)],
        compiler_params=pltpu.CompilerParams(
            dimension_semantics=("arbitrary",),     # carried reduction
            vmem_limit_bytes=_VMEM_LIMIT_BYTES),
    )(scalars, lm, y2, t2)

    return sums[0] / jnp.maximum(sums[1], 1.0)


_tce_loss_jit = jax.jit(_tce_loss_impl)


def tce_loss(y, t, drop_rate, pos_weight=None):
    """Pallas-backed equivalent of the PyTorch tce_loss (y, t: 1-D float32)."""
    n = y.shape[0]
    num_remember = int((1.0 - float(drop_rate)) * n)
    pw = 1.0 if pos_weight is None else float(pos_weight)
    # num_remember / pos_weight are runtime args -> no retrace per iteration.
    return _tce_loss_jit(y, t, jnp.int32(num_remember), jnp.float32(pw))


class RCELoss:
    """JAX/Pallas port of RCE_Loss."""

    def __init__(self, num_iterations, drop_rate=0.2, exponent=1):
        self.num_iterations = num_iterations
        self.drop_rate = drop_rate
        self.exponent = exponent
        self.drop_rate_ls = np.linspace(0, self.drop_rate ** self.exponent,
                                        self.num_iterations)

    def drop_rate_schedule(self, iteration):
        if iteration < self.num_iterations:
            return self.drop_rate_ls[iteration]
        else:
            return self.drop_rate

    def __call__(self, y, t, n_iterations, pos_weight=None):
        drop_rate = self.drop_rate_schedule(n_iterations)
        return tce_loss(y, t, drop_rate, pos_weight)


# ------------------------------ reference -----------------------------------

def _ref_tce_loss(y, t, drop_rate, pos_weight):
    """Pure-JAX reference mirroring the PyTorch semantics (correctness check)."""
    loss = (1.0 - t) * y + jnp.maximum(-y, 0.0) + jnp.log1p(jnp.exp(-jnp.abs(y)))
    loss_mul = loss * t
    ind_sorted = jnp.argsort(loss_mul)
    num_remember = int((1.0 - float(drop_rate)) * y.shape[0])
    ind_update = ind_sorted[:num_remember]
    ys, ts = y[ind_update], t[ind_update]
    pw = 1.0 if pos_weight is None else float(pos_weight)
    lw = 1.0 + (pw - 1.0) * ts
    sel = (1.0 - ts) * ys + lw * (jnp.maximum(-ys, 0.0)
                                  + jnp.log1p(jnp.exp(-jnp.abs(ys))))
    return jnp.mean(sel)


# -------------------------------- main ---------------------------------------

if __name__ == "__main__":
    key = jax.random.PRNGKey(0)
    k1, k2 = jax.random.split(key)

    N = 256                      # flat batch of logits / binary targets
    y = jax.random.normal(k1, (N,), dtype=jnp.float32) * 2.0
    t = jax.random.bernoulli(k2, p=0.5, shape=(N,)).astype(jnp.float32)

    loss_mod = RCELoss(num_iterations=10, drop_rate=0.2, exponent=1)

    # with pos_weight
    out = loss_mod(y, t, n_iterations=5, pos_weight=2.0)
    out = jax.block_until_ready(out)
    ref = _ref_tce_loss(y, t, loss_mod.drop_rate_schedule(5), 2.0)
    assert jnp.allclose(out, ref, rtol=1e-5, atol=1e-5), (out, ref)

    # without pos_weight, iteration past the schedule (same compiled executable)
    out2 = loss_mod(y, t, n_iterations=20, pos_weight=None)
    out2 = jax.block_until_ready(out2)
    ref2 = _ref_tce_loss(y, t, loss_mod.drop_rate_schedule(20), None)
    assert jnp.allclose(out2, ref2, rtol=1e-5, atol=1e-5), (out2, ref2)

    print("KERNEL_OK")
</pallas_src>

<mosaic_0001>
module attributes {stable_mosaic.version = 11 : i64} {
  func.func @_loss_mul_kernel(%arg0: i32, %arg1: memref<8x128xf32, #tpu.memory_space<vmem>>, %arg2: memref<8x128xf32, #tpu.memory_space<vmem>>, %arg3: memref<8x128xf32, #tpu.memory_space<vmem>>) attributes {dimension_semantics = [#tpu.dimension_semantics<parallel>], iteration_bounds = array<i64: 1>, scalar_prefetch = 0 : i64, scratch_operands = 0 : i64, tpu.core_type = #tpu.core_type<tc>, window_params = [{transform_indices = @transform_0, window_bounds = array<i64: 8, 128>}, {transform_indices = @transform_1, window_bounds = array<i64: 8, 128>}, {transform_indices = @transform_2, window_bounds = array<i64: 8, 128>}]} {
    %c0 = arith.constant 0 : index
    %c0_0 = arith.constant 0 : index
    %0 = vector.load %arg1[%c0, %c0_0] : memref<8x128xf32, #tpu.memory_space<vmem>>, vector<8x128xf32>
    %c0_1 = arith.constant 0 : index
    %c0_2 = arith.constant 0 : index
    %1 = vector.load %arg2[%c0_1, %c0_2] : memref<8x128xf32, #tpu.memory_space<vmem>>, vector<8x128xf32>
    %cst = arith.constant 1.000000e+00 : f32
    %2 = vector.broadcast %cst : f32 to vector<8x128xf32>
    %3 = arith.subf %2, %1 : vector<8x128xf32>
    %4 = arith.mulf %3, %0 : vector<8x128xf32>
    %cst_3 = arith.constant 0.000000e+00 : f32
    %5 = vector.broadcast %cst_3 : f32 to vector<8x128xf32>
    %6 = arith.subf %5, %0 : vector<8x128xf32>
    %cst_4 = arith.constant 0.000000e+00 : f32
    %7 = vector.broadcast %cst_4 : f32 to vector<8x128xf32>
    %8 = arith.maximumf %6, %7 : vector<8x128xf32>
    %9 = math.absf %0 : vector<8x128xf32>
    %cst_5 = arith.constant 0.000000e+00 : f32
    %10 = vector.broadcast %cst_5 : f32 to vector<8x128xf32>
    %11 = arith.subf %10, %9 : vector<8x128xf32>
    %12 = math.exp %11 : vector<8x128xf32>
    %13 = math.log1p %12 : vector<8x128xf32>
    %14 = arith.addf %8, %13 : vector<8x128xf32>
    %15 = arith.addf %4, %14 : vector<8x128xf32>
    %16 = arith.mulf %15, %1 : vector<8x128xf32>
    %17 = tpu.iota {dimensions = array<i32: 0>} : vector<8x128xi32>
    %18 = tpu.iota {dimensions = array<i32: 1>} : vector<8x128xi32>
    %c128_i32 = arith.constant 128 : i32
    %19 = arith.muli %arg0, %c128_i32 : i32
    %20 = vector.broadcast %19 : i32 to vector<8x128xi32>
    %21 = arith.addi %18, %20 : vector<8x128xi32>
    %c128_i32_6 = arith.constant 128 : i32
    %22 = vector.broadcast %c128_i32_6 : i32 to vector<8x128xi32>
    %23 = arith.muli %17, %22 : vector<8x128xi32>
    %24 = arith.addi %23, %21 : vector<8x128xi32>
    %c256_i32 = arith.constant 256 : i32
    %25 = vector.broadcast %c256_i32 : i32 to vector<8x128xi32>
    %26 = arith.cmpi slt, %24, %25 : vector<8x128xi32>
    %cst_7 = arith.constant 0x7F800000 : f32
    %27 = vector.broadcast %cst_7 : f32 to vector<8x128xf32>
    %28 = arith.select %26, %16, %27 : vector<8x128xi1>, vector<8x128xf32>
    %c0_8 = arith.constant 0 : index
    %c0_9 = arith.constant 0 : index
    %29 = vector.load %arg3[%c0_8, %c0_9] : memref<8x128xf32, #tpu.memory_space<vmem>>, vector<8x128xf32>
    tpu.vector_store %arg3[%c0_8, %c0_9], %28 {strides = array<i32>} : memref<8x128xf32, #tpu.memory_space<vmem>>, vector<8x128xf32>,
    return
  }
  func.func @transform_0(%arg0: i32) -> (i32, i32) {
    %c0_i32 = arith.constant 0 : i32
    %c0_i32_0 = arith.constant 0 : i32
    return %c0_i32, %arg0 : i32, i32
  }
  func.func @transform_1(%arg0: i32) -> (i32, i32) {
    %c0_i32 = arith.constant 0 : i32
    %c0_i32_0 = arith.constant 0 : i32
    return %c0_i32, %arg0 : i32, i32
  }
  func.func @transform_2(%arg0: i32) -> (i32, i32) {
    %c0_i32 = arith.constant 0 : i32
    %c0_i32_0 = arith.constant 0 : i32
    return %c0_i32, %arg0 : i32, i32
  }
}

module attributes {stable_mosaic.version = 11 : i64} {
  func.func @_masked_sum_kernel(%arg0: i32, %arg1: memref<2xf32, #tpu.memory_space<smem>>, %arg2: memref<8x128xf32, #tpu.memory_space<vmem>>, %arg3: memref<8x128xf32, #tpu.memory_space<vmem>>, %arg4: memref<8x128xf32, #tpu.memory_space<vmem>>, %arg5: memref<2xf32, #tpu.memory_space<smem>>, %arg6: memref<8x1xf32, #tpu.memory_space<vmem>>, %arg7: memref<8x1xf32, #tpu.memory_space<vmem>>) attributes {dimension_semantics = [#tpu.dimension_semantics<arbitrary>], iteration_bounds = array<i64: 1>, scalar_prefetch = 0 : i64, scratch_operands = 2 : i64, tpu.core_type = #tpu.core_type<tc>, window_params = [{transform_indices = @transform_0, window_bounds = array<i64: 2>}, {transform_indices = @transform_1, window_bounds = array<i64: 8, 128>}, {transform_indices = @transform_2, window_bounds = array<i64: 8, 128>}, {transform_indices = @transform_3, window_bounds = array<i64: 8, 128>}, {transform_indices = @transform_4, window_bounds = array<i64: 2>}]} {
    %c0_i32 = arith.constant 0 : i32
    %0 = arith.cmpi eq, %arg0, %c0_i32 : i32
    %1 = arith.extui %0 : i1 to i32
    %c0_i32_0 = arith.constant 0 : i32
    %2 = arith.cmpi ne, %1, %c0_i32_0 : i32
    scf.if %2 {
      %cst_23 = arith.constant 0.000000e+00 : f32
      %45 = vector.broadcast %cst_23 : f32 to vector<8x1xf32>
      %c0_24 = arith.constant 0 : index
      %c0_25 = arith.constant 0 : index
      %46 = vector.load %arg6[%c0_24, %c0_25] : memref<8x1xf32, #tpu.memory_space<vmem>>, vector<8x1xf32>
      tpu.vector_store %arg6[%c0_24, %c0_25], %45 {strides = array<i32>} : memref<8x1xf32, #tpu.memory_space<vmem>>, vector<8x1xf32>,
      %cst_26 = arith.constant 0.000000e+00 : f32
      %47 = vector.broadcast %cst_26 : f32 to vector<8x1xf32>
      %c0_27 = arith.constant 0 : index
      %c0_28 = arith.constant 0 : index
      %48 = vector.load %arg7[%c0_27, %c0_28] : memref<8x1xf32, #tpu.memory_space<vmem>>, vector<8x1xf32>
      tpu.vector_store %arg7[%c0_27, %c0_28], %47 {strides = array<i32>} : memref<8x1xf32, #tpu.memory_space<vmem>>, vector<8x1xf32>,
    } else {
    }
    %c0 = arith.constant 0 : index
    %3 = memref.load %arg1[%c0] : memref<2xf32, #tpu.memory_space<smem>>
    %c1 = arith.constant 1 : index
    %4 = memref.load %arg1[%c1] : memref<2xf32, #tpu.memory_space<smem>>
    %c0_1 = arith.constant 0 : index
    %c0_2 = arith.constant 0 : index
    %5 = vector.load %arg3[%c0_1, %c0_2] : memref<8x128xf32, #tpu.memory_space<vmem>>, vector<8x128xf32>
    %c0_3 = arith.constant 0 : index
    %c0_4 = arith.constant 0 : index
    %6 = vector.load %arg4[%c0_3, %c0_4] : memref<8x128xf32, #tpu.memory_space<vmem>>, vector<8x128xf32>
    %cst = arith.constant 0.000000e+00 : f32
    %7 = vector.broadcast %cst : f32 to vector<8x128xf32>
    %8 = arith.subf %7, %5 : vector<8x128xf32>
    %cst_5 = arith.constant 0.000000e+00 : f32
    %9 = vector.broadcast %cst_5 : f32 to vector<8x128xf32>
    %10 = arith.maximumf %8, %9 : vector<8x128xf32>
    %11 = math.absf %5 : vector<8x128xf32>
    %cst_6 = arith.constant 0.000000e+00 : f32
    %12 = vector.broadcast %cst_6 : f32 to vector<8x128xf32>
    %13 = arith.subf %12, %11 : vector<8x128xf32>
    %14 = math.exp %13 : vector<8x128xf32>
    %15 = math.log1p %14 : vector<8x128xf32>
    %16 = arith.addf %10, %15 : vector<8x128xf32>
    %17 = vector.broadcast %4 : f32 to vector<8x128xf32>
    %18 = arith.mulf %17, %6 : vector<8x128xf32>
    %cst_7 = arith.constant 1.000000e+00 : f32
    %19 = vector.broadcast %cst_7 : f32 to vector<8x128xf32>
    %20 = arith.addf %19, %18 : vector<8x128xf32>
    %cst_8 = arith.constant 1.000000e+00 : f32
    %21 = vector.broadcast %cst_8 : f32 to vector<8x128xf32>
    %22 = arith.subf %21, %6 : vector<8x128xf32>
    %23 = arith.mulf %22, %5 : vector<8x128xf32>
    %24 = arith.mulf %20, %16 : vector<8x128xf32>
    %25 = arith.addf %23, %24 : vector<8x128xf32>
    %c0_9 = arith.constant 0 : index
    %c0_10 = arith.constant 0 : index
    %26 = vector.load %arg2[%c0_9, %c0_10] : memref<8x128xf32, #tpu.memory_space<vmem>>, vector<8x128xf32>
    %27 = vector.broadcast %3 : f32 to vector<8x128xf32>
    %28 = arith.cmpf ole, %26, %27 : vector<8x128xf32>
    %29 = arith.extui %28 : vector<8x128xi1> to vector<8x128xi32>
    %30 = arith.sitofp %29 : vector<8x128xi32> to vector<8x128xf32>
    %c0_11 = arith.constant 0 : index
    %c0_12 = arith.constant 0 : index
    %31 = vector.load %arg6[%c0_11, %c0_12] : memref<8x1xf32, #tpu.memory_space<vmem>>, vector<8x1xf32>
    %32 = arith.mulf %25, %30 : vector<8x128xf32>
    %cst_13 = arith.constant dense<0.000000e+00> : vector<8xf32>
    %33 = vector.multi_reduction <add>, %32, %cst_13 [1] : vector<8x128xf32> to vector<8xf32>
    %34 = vector.shape_cast %33 : vector<8xf32> to vector<8x1xf32>
    %35 = arith.addf %31, %34 : vector<8x1xf32>
    %c0_14 = arith.constant 0 : index
    %c0_15 = arith.constant 0 : index
    %36 = vector.load %arg6[%c0_14, %c0_15] : memref<8x1xf32, #tpu.memory_space<vmem>>, vector<8x1xf32>
    tpu.vector_store %arg6[%c0_14, %c0_15], %35 {strides = array<i32>} : memref<8x1xf32, #tpu.memory_space<vmem>>, vector<8x1xf32>,
    %c0_16 = arith.constant 0 : index
    %c0_17 = arith.constant 0 : index
    %37 = vector.load %arg7[%c0_16, %c0_17] : memref<8x1xf32, #tpu.memory_space<vmem>>, vector<8x1xf32>
    %cst_18 = arith.constant dense<0.000000e+00> : vector<8xf32>
    %38 = vector.multi_reduction <add>, %30, %cst_18 [1] : vector<8x128xf32> to vector<8xf32>
    %39 = vector.shape_cast %38 : vector<8xf32> to vector<8x1xf32>
    %40 = arith.addf %37, %39 : vector<8x1xf32>
    %c0_19 = arith.constant 0 : index
    %c0_20 = arith.constant 0 : index
    %41 = vector.load %arg7[%c0_19, %c0_20] : memref<8x1xf32, #tpu.memory_space<vmem>>, vector<8x1xf32>
    tpu.vector_store %arg7[%c0_19, %c0_20], %40 {strides = array<i32>} : memref<8x1xf32, #tpu.memory_space<vmem>>, vector<8x1xf32>,
    %c0_i32_21 = arith.constant 0 : i32
    %42 = arith.cmpi eq, %arg0, %c0_i32_21 : i32
    %43 = arith.extui %42 : i1 to i32
    %c0_i32_22 = arith.constant 0 : i32
    %44 = arith.cmpi ne, %43, %c0_i32_22 : i32
    scf.if %44 {
      %c0_23 = arith.constant 0 : index
      %c0_24 = arith.constant 0 : index
      %45 = vector.load %arg6[%c0_23, %c0_24] : memref<8x1xf32, #tpu.memory_space<vmem>>, vector<8x1xf32>
      %46 = vector.shape_cast %45 : vector<8x1xf32> to vector<1x8x1xf32>
      %cst_25 = arith.constant dense<0.000000e+00> : vector<1xf32>
      %47 = vector.multi_reduction <add>, %46, %cst_25 [1, 2] : vector<1x8x1xf32> to vector<1xf32>
      %48 = vector.shape_cast %47 : vector<1xf32> to vector<1x1x1xf32>
      %49 = vector.extract %48[0, 0, 0] : f32 from vector<1x1x1xf32>
      %c0_26 = arith.constant 0 : index
      %50 = memref.load %arg5[%c0_26] : memref<2xf32, #tpu.memory_space<smem>>
      memref.store %49, %arg5[%c0_26] : memref<2xf32, #tpu.memory_space<smem>>
      %c0_27 = arith.constant 0 : index
      %c0_28 = arith.constant 0 : index
      %51 = vector.load %arg7[%c0_27, %c0_28] : memref<8x1xf32, #tpu.memory_space<vmem>>, vector<8x1xf32>
      %52 = vector.shape_cast %51 : vector<8x1xf32> to vector<1x8x1xf32>
      %cst_29 = arith.constant dense<0.000000e+00> : vector<1xf32>
      %53 = vector.multi_reduction <add>, %52, %cst_29 [1, 2] : vector<1x8x1xf32> to vector<1xf32>
      %54 = vector.shape_cast %53 : vector<1xf32> to vector<1x1x1xf32>
      %55 = vector.extract %54[0, 0, 0] : f32 from vector<1x1x1xf32>
      %c1_30 = arith.constant 1 : index
      %56 = memref.load %arg5[%c1_30] : memref<2xf32, #tpu.memory_space<smem>>
      memref.store %55, %arg5[%c1_30] : memref<2xf32, #tpu.memory_space<smem>>
    } else {
    }
    return
  }
  func.func @transform_0(%arg0: i32) -> i32 {
    %c0_i32 = arith.constant 0 : i32
    %c0_i32_0 = arith.constant 0 : i32
    return %c0_i32 : i32
  }
  func.func @transform_1(%arg0: i32) -> (i32, i32) {
    %c0_i32 = arith.constant 0 : i32
    %c0_i32_0 = arith.constant 0 : i32
    return %c0_i32, %arg0 : i32, i32
  }
  func.func @transform_2(%arg0: i32) -> (i32, i32) {
    %c0_i32 = arith.constant 0 : i32
    %c0_i32_0 = arith.constant 0 : i32
    return %c0_i32, %arg0 : i32, i32
  }
  func.func @transform_3(%arg0: i32) -> (i32, i32) {
    %c0_i32 = arith.constant 0 : i32
    %c0_i32_0 = arith.constant 0 : i32
    return %c0_i32, %arg0 : i32, i32
  }
  func.func @transform_4(%arg0: i32) -> i32 {
    %c0_i32 = arith.constant 0 : i32
    %c0_i32_0 = arith.constant 0 : i32
    return %c0_i32 : i32
  }
}

</mosaic_0001>

<llo_original>
// kernel: _tce_loss_impl.2
$region0: #{_tce_loss_impl.2}
  #allocation0 [shape = 'u32[]', space=smem, size = 0x4, offset = 0x4, fixed_abs, tag = 'smem constant byte address 0x4 - core index']
  #allocation1 [shape = 'u32[144,128]{1,0:T(1,128)}', space=vmem, size = 0x12000, scoped, tag = 'internal scratch']
  %s0 = inlined_call_operand.vmem [shape: f32[8,128], index: 0, kind: input, shape index: {}]
  %s1 = inlined_call_operand.vmem [shape: f32[8,128], index: 1, kind: input, shape index: {}]
  %s2 = inlined_call_operand.vmem [shape: f32[8,128], index: 2, kind: output, shape index: {}]
  %s3 = sld [smem:[#allocation0]]
  $region18: #{_tce_loss_impl.2} parent=0
    _
  %s5 = ssub.s32 1, %s3
  %s6 = scalar_select 0, %s5, %s3
  // Predicated region
  $region2: #{_tce_loss_impl.2} parent=0 // pred_check
    _
  $region3: #{_tce_loss_impl.2} parent=0 // pred_check_branch
    %8 = sbr.rel (0) target = $region5
  $region4: #{_tce_loss_impl.2} parent=0 // pred_region
    _
  $region5: #{_tce_loss_impl.2} parent=0 // pred_fallthru
    _
  // Predicated region
  $region6: #{_tce_loss_impl.2} parent=0 // pred_check
    _
  $region7: #{_tce_loss_impl.2} parent=0 // pred_check_branch
    %10 = sbr.rel (0) target = $region9
  $region8: #{_tce_loss_impl.2} parent=0 // pred_region
    _
  $region9: #{_tce_loss_impl.2} parent=0 // pred_fallthru
    _
  %v11 = vld [vmem:[%s0] sm:$0xff]
  %v12 = vld [vmem:[%s1] sm:$0xff]
  %v13 = vsub.f32 1.0, %v12
  %v14 = vmul.f32 %v13, %v11
  %v15 = vsub.f32 0.0, %v11
  %v16 = vmax.f32 %v15, 0.0
  %v17 = vand.u32 2147483647, %v11
  %v18 = vsub.f32 0.0, %v17
  %v19 = vmul.f32 %v18, 1.442695
  %v20 = vpow.pop %v19
  %v21 = vadd.f32 %v20, 1.0
  %v22 = vlog2.pop %v21
  %v23 = vmul.f32 %v22, 0.6931472
  %v24 = vmul.f32 -0.5, %v20
  %v25 = vadd.f32 %v24, 1.0
  %v26 = vmul.f32 %v25, %v20
  %v27 = vand.u32 2147483647, %v20
  %vm28 = vcmp.lt.f32.partialorder %v27, 0.0004427343
  %v29 = vsel %vm28, %v26, %v23
  %v30 = vadd.f32 %v16, %v29
  %v31 = vadd.f32 %v14, %v30
  %v32 = vmul.f32 %v31, %v12
  %v33 = vlaneseq
  %v34 = vshrl.u32 %v33, 7
  %v35 = vlaneseq
  %v36 = vand.u32 %v35, 127
  %s37 = smul.u32 0, 128
  %v38 = vstv %s37
  %v39 = vadd.s32 %v36, %v38
  %v40 = vmul.u32 %v34, 128
  %v41 = vadd.s32 %v40, %v39
  %vm42 = vcmp.lt.s32.totalorder %v41, 256
  %v43 = vsel %vm42, %v32, inf
  %44 = vst [vmem:[%s2] sm:$0xff] %v43
  // Predicated region
  $region10: #{_tce_loss_impl.2} parent=0 // pred_check
    _
  $region11: #{_tce_loss_impl.2} parent=0 // pred_check_branch
    %46 = sbr.rel (0) target = $region13
  $region12: #{_tce_loss_impl.2} parent=0 // pred_region
    _
  $region13: #{_tce_loss_impl.2} parent=0 // pred_fallthru
    _
  // Predicated region
  $region14: #{_tce_loss_impl.2} parent=0 // pred_check
    _
  $region15: #{_tce_loss_impl.2} parent=0 // pred_check_branch
    %48 = sbr.rel (0) target = $region17
  $region16: #{_tce_loss_impl.2} parent=0 // pred_region
    _
  $region17: #{_tce_loss_impl.2} parent=0 // pred_fallthru
    _

// kernel: _tce_loss_impl.3
$region0: #{_tce_loss_impl.3}
  #allocation0 [shape = 'u32[]', space=smem, size = 0x4, offset = 0x4, fixed_abs, tag = 'smem constant byte address 0x4 - core index']
  #allocation1 [shape = 'u32[144,128]{1,0:T(1,128)}', space=vmem, size = 0x12000, scoped, tag = 'internal scratch']
  #allocation2 [shape = 'f32[8,1]{1,0:T(8,128)}', space=vmem, size = 0x1000, scoped, tag = 'scratch operand']
  #allocation3 [shape = 'f32[8,1]{1,0:T(8,128)}', space=vmem, size = 0x1000, scoped, tag = 'scratch operand']
  %s0 = inlined_call_operand.vmem [shape: f32[2], index: 0, kind: input, shape index: {}]
  %s1 = inlined_call_operand.vmem [shape: f32[8,128], index: 1, kind: input, shape index: {}]
  %s2 = inlined_call_operand.vmem [shape: f32[8,128], index: 2, kind: input, shape index: {}]
  %s3 = inlined_call_operand.vmem [shape: f32[8,128], index: 3, kind: input, shape index: {}]
  %s4 = inlined_call_operand.vmem [shape: f32[2], index: 4, kind: output, shape index: {}]
  %s5 = sld [smem:[#allocation0]]
  $region38: #{_tce_loss_impl.3} parent=0
    _
  %s7 = ssub.s32 1, %s5
  %s8 = scalar_select 0, %s7, %s5
  $region1: #{_tce_loss_impl.3} parent=0
    #allocation4 [shape = 'u8[512]{0}', space=smem, size = 0x200, scoped, tag = 'input window, operand 0, single buffered']
    #allocation5 [shape = 's32[1]{0}', space=sflag, size = 0x4, scoped, tag = 'scoped memory for _tce_loss_impl.3']
    #allocation6 [shape = 's32[1]{0}', space=sflag, size = 0x4, scoped, tag = 'scoped memory for _tce_loss_impl.3']
    #allocation7 [shape = 'u8[512]{0}', space=smem, size = 0x200, scoped, tag = 'output window, operand 0, single buffered']
    %9 = vsyncpa [#allocation5], 0
    %10 = vsyncpa [#allocation6], 0
    // Predicated region
    $region2: #{_tce_loss_impl.3} parent=1 // pred_check
      _
    $region3: #{_tce_loss_impl.3} parent=1 // pred_check_branch
      %12 = sbr.rel (0) target = $region5
    $region4: #{_tce_loss_impl.3} parent=1 // pred_region
      %s14 = ssub.s32 16, 16
      %15 = vsyncadd [#allocation5], %s14
      %s17 = sshll.u32 %s0, 4
      %s18 = int_to_ptr.vmem [resolvable:$true] %s17
      %20 = dma.vmem_to_smem %s18, 16, [#allocation4], [#allocation5]
    $region5: #{_tce_loss_impl.3} parent=1 // pred_fallthru
      _
    // Predicated region
    $region6: #{_tce_loss_impl.3} parent=1 // pred_check
      _
    $region7: #{_tce_loss_impl.3} parent=1 // pred_check_branch
      %22 = sbr.rel (0) target = $region9
    $region8: #{_tce_loss_impl.3} parent=1 // pred_region
      _
    $region9: #{_tce_loss_impl.3} parent=1 // pred_fallthru
      _
    // Predicated region
    $region10: #{_tce_loss_impl.3} parent=1 // pred_check
      _
    $region11: #{_tce_loss_impl.3} parent=1 // pred_check_branch
      %24 = sbr.rel (0) target = $region13
    $region12: #{_tce_loss_impl.3} parent=1 // pred_region
      _
    $region13: #{_tce_loss_impl.3} parent=1 // pred_fallthru
      _
    // Predicated region
    $region14: #{_tce_loss_impl.3} parent=1 // pred_check
      _
    $region15: #{_tce_loss_impl.3} parent=1 // pred_check_branch
      %26 = sbr.rel (0) target = $region17
    $region16: #{_tce_loss_impl.3} parent=1 // pred_region
      _
    $region17: #{_tce_loss_impl.3} parent=1 // pred_fallthru
      _
    // Predicated region
    $region18: #{_tce_loss_impl.3} parent=1 // pred_check
      _
    $region19: #{_tce_loss_impl.3} parent=1 // pred_check_branch
      %28 = sbr.rel (0) target = $region21
    $region20: #{_tce_loss_impl.3} parent=1 // pred_region
      %29 = dma.done [#allocation5], 16
    $region21: #{_tce_loss_impl.3} parent=1 // pred_fallthru
      _
    %30 = sfence
    %p31 = scmp.eq.s32.totalorder 0, 0
    // Predicated region
    $region22: #{_tce_loss_impl.3} parent=1 // pred_check
      %p32 = pneg %p31
    $region23: #{_tce_loss_impl.3} parent=1 // pred_check_branch
      %34 = sbr.rel (%p32) target = $region25
    $region24: #{_tce_loss_impl.3} parent=1 // pred_region
      %vm35 = vcmask 7168
      %36 = vst.msk [vmem:[#allocation2] sm:$0xff] %vm35, 0.0
      %37 = vst.msk [vmem:[#allocation3] sm:$0xff] %vm35, 0.0
    $region25: #{_tce_loss_impl.3} parent=1 // pred_fallthru
      _
    %s38 = sld [smem:[#allocation4]]
    %s39 = sld [smem:[#allocation4 + $0x1]]
    %v40 = vld [vmem:[%s2] sm:$0xff]
    %v41 = vld [vmem:[%s3] sm:$0xff]
    %v42 = vsub.f32 0.0, %v40
    %v43 = vmax.f32 %v42, 0.0
    %v44 = vand.u32 2147483647, %v40
    %v45 = vsub.f32 0.0, %v44
    %v46 = vmul.f32 %v45, 1.442695
    %v47 = vpow.pop %v46
    %v48 = vadd.f32 %v47, 1.0
    %v49 = vlog2.pop %v48
    %v50 = vmul.f32 %v49, 0.6931472
    %v51 = vmul.f32 -0.5, %v47
    %v52 = vadd.f32 %v51, 1.0
    %v53 = vmul.f32 %v52, %v47
    %v54 = vand.u32 2147483647, %v47
    %vm55 = vcmp.lt.f32.partialorder %v54, 0.0004427343
    %v56 = vsel %vm55, %v53, %v50
    %v57 = vadd.f32 %v43, %v56
    %v58 = vstv %s39
    %v59 = vmul.f32 %v58, %v41
    %v60 = vadd.f32 %v59, 1.0
    %v61 = vsub.f32 1.0, %v41
    %v62 = vmul.f32 %v61, %v40
    %v63 = vmul.f32 %v60, %v57
    %v64 = vadd.f32 %v62, %v63
    %v65 = vld [vmem:[%s1] sm:$0xff]
    %v66 = vstv %s38
    %vm67 = vcmp.le.f32.partialorder %v65, %v66
    %v68 = vsel %vm67, 1, 0
    %v69 = vcvt.s32.f32 %v68
    %v70 = vld [vmem:[#allocation2] sm:$0xff]
    %v71 = vmul.f32 %v64, %v69
    %72 = vadd.xlane.f32.xlu0 %v71
    %v73 = vpop.xlane.xlu0 %72
    %v74 = vadd.f32 %v70, %v73
    %vm75 = vcmask 7168
    %76 = vst.msk [vmem:[#allocation2] sm:$0xff] %vm75, %v74
    %v77 = vld [vmem:[#allocation3] sm:$0xff]
    %78 = vadd.xlane.f32.xlu0 %v69
    %v79 = vpop.xlane.xlu0 %78
    %v80 = vadd.f32 %v77, %v79
    %81 = vst.msk [vmem:[#allocation3] sm:$0xff] %vm75, %v80
    // Predicated region
    $region26: #{_tce_loss_impl.3} parent=1 // pred_check
      %p82 = pneg %p31
    $region27: #{_tce_loss_impl.3} parent=1 // pred_check_branch
      %84 = sbr.rel (%p82) target = $region29
    $region28: #{_tce_loss_impl.3} parent=1 // pred_region
      %v85 = vld [vmem:[#allocation2] sm:$0xff]
      %v86 = vsel %vm75, %v85, 0.0
      %87 = vadd.xlane.f32.xlu0 %v86
      %v88 = vpop.xlane.xlu0 %87
      %v89 = vrot.slane %v88, 4
      %v90 = vadd.f32 %v88, %v89
      %v91 = vrot.slane %v90, 2
      %v92 = vadd.f32 %v90, %v91
      %v93 = vrot.slane %v92, 1
      %v94 = vadd.f32 %v92, %v93
      %s95 = vtos %v94
      %s96 = scalar_lea.smem [#allocation7], 0
      %97 = sst [smem:[%s96]] %s95
      %v98 = vld [vmem:[#allocation3] sm:$0xff]
      %v99 = vsel %vm75, %v98, 0.0
      %100 = vadd.xlane.f32.xlu0 %v99
      %v101 = vpop.xlane.xlu0 %100
      %v102 = vrot.slane %v101, 4
      %v103 = vadd.f32 %v101, %v102
      %v104 = vrot.slane %v103, 2
      %v105 = vadd.f32 %v103, %v104
      %v106 = vrot.slane %v105, 1
      %v107 = vadd.f32 %v105, %v106
      %s108 = vtos %v107
      %s109 = scalar_lea.smem [#allocation7], 1
      %110 = sst [smem:[%s109]] %s108
    $region29: #{_tce_loss_impl.3} parent=1 // pred_fallthru
      _
    // Predicated region
    $region30: #{_tce_loss_impl.3} parent=1 // pred_check
      _
    $region31: #{_tce_loss_impl.3} parent=1 // pred_check_branch
      %112 = sbr.rel (0) target = $region33
    $region32: #{_tce_loss_impl.3} parent=1 // pred_region
      %s114 = ssub.s32 16, 16
      %115 = vsyncadd [#allocation6], %s114
      %s117 = sshll.u32 %s4, 4
      %s118 = int_to_ptr.vmem [resolvable:$true] %s117
      %120 = dma.smem_to_vmem [#allocation7], 16, %s118, [#allocation6]
    $region33: #{_tce_loss_impl.3} parent=1 // pred_fallthru
      _
    // Predicated region
    $region34: #{_tce_loss_impl.3} parent=1 // pred_check
      _
    $region35: #{_tce_loss_impl.3} parent=1 // pred_check_branch
      %122 = sbr.rel (0) target = $region37
    $region36: #{_tce_loss_impl.3} parent=1 // pred_region
      %123 = dma.done [#allocation6], 16
    $region37: #{_tce_loss_impl.3} parent=1 // pred_fallthru
      _
    %124 = sfence
    %125 = vsyncpa [#allocation5], 1
    %126 = vsyncpa [#allocation6], 1

</llo_original>
